<compile_context>
chip_gen: v7x
topology: tpu7x:2x2x1
jax: 0.10.0
libtpu: 0.0.40
codegen_flags: <defaults>
</compile_context>

<pallas_src>
import jax
import jax.numpy as jnp
from jax.experimental import pallas as pl
from jax.experimental.pallas import tpu as pltpu


def label_classifier_kernel(x_ref, w1_ref, b1_ref, w2_ref, b2_ref, o_ref):
    # x: (TB, 64) f32/bf16, w1: (64, 32), b1: (1, 32), w2: (1, 32), b2: (1,) in SMEM.
    # o: (8, TB//8) f32 lane-dense slab; tile-local row r -> o[r // (TB//8), r % (TB//8)].
    x = x_ref[...]
    # Layer 1 on the MXU with f32 accumulation.  Default matmul precision already
    # matches the f32 reference well below the test tolerance here.
    h = jnp.dot(x, w1_ref[...], preferred_element_type=jnp.float32) + b1_ref[...]
    h = jnp.maximum(h, 0.0)  # ReLU, (TB, 32)
    # Layer 2 (N=1), lane-dense: contract the 32-wide hidden dim of w2 (1, 32)
    # against the last dim of h (TB, 32)  ->  y (1, TB)  (classic q @ k^T MXU pattern).
    # Keeps the batch dim on lanes so sigmoid (EUP) and the store stay dense.
    y = jax.lax.dot_general(
        w2_ref[...], h,
        dimension_numbers=(((1,), (1,)), ((), ())),
        preferred_element_type=jnp.float32,
    ) + b2_ref[0]
    o_ref[...] = jax.nn.sigmoid(y).reshape(o_ref.shape).astype(o_ref.dtype)


def _round_up(x, m):
    return ((x + m - 1) // m) * m


def label_classifier(feature, w1, b1, w2, b2, *, tb=8192, stream_bf16=False):
    """feature: (B, 64) -> (B, 1) float32 in [0, 1]."""
    B, f_in = feature.shape
    assert f_in == 64, "LabelClassfier expects 64 input features"

    w1m = jnp.asarray(w1, jnp.float32).reshape(64, 32)
    b1_row = jnp.asarray(b1, jnp.float32).reshape(1, 32)
    w2_row = jnp.asarray(w2, jnp.float32).reshape(1, 32)
    b2_s = jnp.asarray(b2, jnp.float32).reshape(1)

    if stream_bf16:
        # Opt-in: halve HBM bytes for the dominant (B, 64) feature stream.
        feature = feature.astype(jnp.bfloat16)
        w1m = w1m.astype(jnp.bfloat16)
    else:
        feature = feature.astype(jnp.float32)

    # Batch tile: large (up to tb) for streaming throughput, capped at ~B/2 so the
    # grid has >=2 parallel steps (both v7x TensorCores), sublane-aligned
    # (8 rows f32 / 16 rows bf16).  No wrapper-side padding: the ragged trailing
    # block is handled by Pallas and the junk tail rows are sliced off below.
    sub = 16 if stream_bf16 else 8
    tb = max(sub, (tb // sub) * sub)
    TB = min(tb, _round_up(pl.cdiv(B, 2), sub))
    num_tiles = pl.cdiv(B, TB)

    # VMEM budget from actual tile sizes, with 2x headroom, capped at 32 MiB
    # (well inside v7x's 64 MiB physical VMEM).
    feat_bytes = feature.dtype.itemsize
    vmem_need = (
        2 * TB * 64 * feat_bytes      # double-buffered feature tiles
        + 2 * TB * 4                  # double-buffered output tiles
        + 3 * TB * 32 * 4             # (TB, 32) f32 intermediates (h / relu / matmul feed)
        + 4 * (64 * 32 + 3 * 32) * 4  # resident params (double-buffered, tiny)
    )
    vmem_limit = int(min(32 * 1024 * 1024, max(8 * 1024 * 1024, 2 * vmem_need)))

    cost = pl.CostEstimate(
        flops=2 * B * 64 * 32 + 2 * B * 32,
        transcendentals=B,
        bytes_accessed=B * 64 * feat_bytes + B * 4 + (64 * 32 + 32 + 32 + 1) * 4,
    )

    out = pl.pallas_call(
        label_classifier_kernel,
        out_shape=jax.ShapeDtypeStruct((num_tiles * 8, TB // 8), jnp.float32),
        grid=(num_tiles,),
        in_specs=[
            # TODO(synk): add pipeline_mode=pl.Buffered(3) here if a profile still
            # shows exposed DMA after the larger tiles.
            pl.BlockSpec((TB, 64), lambda i: (i, 0)),   # streamed feature tile
            pl.BlockSpec((64, 32), lambda i: (0, 0)),   # VMEM-resident w1
            pl.BlockSpec((1, 32), lambda i: (0, 0)),    # VMEM-resident b1
            pl.BlockSpec((1, 32), lambda i: (0, 0)),    # VMEM-resident w2 row
            pl.BlockSpec(memory_space=pltpu.SMEM),      # scalar b2
        ],
        out_specs=pl.BlockSpec((8, TB // 8), lambda i: (i, 0)),
        compiler_params=pltpu.CompilerParams(
            dimension_semantics=("parallel",),
            vmem_limit_bytes=vmem_limit,
        ),
        cost_estimate=cost,
    )(feature, w1m, b1_row, w2_row, b2_s)

    # Lane-dense (num_tiles*8, TB//8) slab -> (B, 1); padded tail rows discarded.
    return out.reshape(-1)[:B].reshape(B, 1)


def init_params(key):
    """Deterministic init mimicking nn.Linear default: U(-1/sqrt(fan_in), +1/sqrt(fan_in))."""
    k1, k2, k3, k4 = jax.random.split(key, 4)
    bound1 = 1.0 / jnp.sqrt(64.0)
    bound2 = 1.0 / jnp.sqrt(32.0)
    w1 = jax.random.uniform(k1, (64, 32), jnp.float32, -bound1, bound1)
    b1 = jax.random.uniform(k2, (1, 32), jnp.float32, -bound1, bound1)
    w2 = jax.random.uniform(k3, (32, 1), jnp.float32, -bound2, bound2)
    b2 = jax.random.uniform(k4, (1, 1), jnp.float32, -bound2, bound2)
    return w1, b1, w2, b2


def _reference(feature, w1, b1, w2, b2):
    return jax.nn.sigmoid(jnp.maximum(feature @ w1 + b1, 0.0) @ w2 + b2)


if __name__ == "__main__":
    key = jax.random.PRNGKey(0)
    k_x, k_x2, k_x3, k_p = jax.random.split(key, 4)
    w1, b1, w2, b2 = init_params(k_p)

    # 1) Small module-sized input (single tile).
    batch = 8
    feature = jax.random.normal(k_x, (batch, 64), jnp.float32)
    out = jax.block_until_ready(label_classifier(feature, w1, b1, w2, b2))
    ref = _reference(feature, w1, b1, w2, b2)
    assert out.shape == (batch, 1)
    assert jnp.allclose(out, ref, atol=1e-4, rtol=1e-4)

    # 2) Multi-tile grid + ragged trailing block (B not a multiple of TB or of 8),
    #    with no wrapper-side padding.
    batch2 = 300
    feature2 = jax.random.normal(k_x2, (batch2, 64), jnp.float32)
    out2 = jax.block_until_ready(label_classifier(feature2, w1, b1, w2, b2, tb=1024))
    ref2 = _reference(feature2, w1, b1, w2, b2)
    assert out2.shape == (batch2, 1)
    assert jnp.allclose(out2, ref2, atol=1e-4, rtol=1e-4)

    # 3) Opt-in bf16 feature streaming (f32 MXU accumulation), looser tolerance.
    batch3 = 64
    feature3 = jax.random.normal(k_x3, (batch3, 64), jnp.float32)
    out3 = jax.block_until_ready(
        label_classifier(feature3, w1, b1, w2, b2, stream_bf16=True))
    ref3 = _reference(feature3, w1, b1, w2, b2)
    assert out3.shape == (batch3, 1)
    assert jnp.allclose(out3, ref3, atol=2e-2, rtol=2e-2)

    print("KERNEL_OK")
</pallas_src>

<mosaic_0001>
module attributes {stable_mosaic.version = 11 : i64} {
  func.func @label_classifier_kernel(%arg0: i32, %arg1: memref<8x64xf32, #tpu.memory_space<vmem>>, %arg2: memref<64x32xf32, #tpu.memory_space<vmem>>, %arg3: memref<1x32xf32, #tpu.memory_space<vmem>>, %arg4: memref<1x32xf32, #tpu.memory_space<vmem>>, %arg5: memref<1xf32, #tpu.memory_space<smem>>, %arg6: memref<8x1xf32, #tpu.memory_space<vmem>>) attributes {dimension_semantics = [#tpu.dimension_semantics<parallel>], iteration_bounds = array<i64: 1>, scalar_prefetch = 0 : i64, scratch_operands = 0 : i64, tpu.core_type = #tpu.core_type<tc>, window_params = [{transform_indices = @transform_0, window_bounds = array<i64: 8, 64>}, {pipeline_mode = #tpu.pipeline_mode<synchronous>, transform_indices = @transform_1, window_bounds = array<i64: 64, 32>}, {pipeline_mode = #tpu.pipeline_mode<synchronous>, transform_indices = @transform_2, window_bounds = array<i64: 1, 32>}, {pipeline_mode = #tpu.pipeline_mode<synchronous>, transform_indices = @transform_3, window_bounds = array<i64: 1, 32>}, {transform_indices = @transform_4, window_bounds = array<i64: 1>}, {transform_indices = @transform_5, window_bounds = array<i64: 8, 1>}]} {
    %c0 = arith.constant 0 : index
    %c0_0 = arith.constant 0 : index
    %0 = vector.load %arg1[%c0, %c0_0] : memref<8x64xf32, #tpu.memory_space<vmem>>, vector<8x64xf32>
    %c0_1 = arith.constant 0 : index
    %c0_2 = arith.constant 0 : index
    %1 = vector.load %arg2[%c0_1, %c0_2] : memref<64x32xf32, #tpu.memory_space<vmem>>, vector<64x32xf32>
    %cst = arith.constant dense<0.000000e+00> : vector<8x32xf32>
    %2 = tpu.matmul %0, %1, %cst {dimension_numbers = #tpu.dot_dimension_numbers<[1], [0], [0], [1], [0, 0, 1, 1], [], []>} : vector<8x64xf32>, vector<64x32xf32>, vector<8x32xf32> -> vector<8x32xf32>
    %c0_3 = arith.constant 0 : index
    %c0_4 = arith.constant 0 : index
    %3 = vector.load %arg3[%c0_3, %c0_4] : memref<1x32xf32, #tpu.memory_space<vmem>>, vector<1x32xf32>
    %4 = vector.broadcast %3 : vector<1x32xf32> to vector<8x32xf32>
    %5 = arith.addf %2, %4 : vector<8x32xf32>
    %cst_5 = arith.constant 0.000000e+00 : f32
    %6 = vector.broadcast %cst_5 : f32 to vector<8x32xf32>
    %7 = arith.maximumf %5, %6 : vector<8x32xf32>
    %c0_6 = arith.constant 0 : index
    %c0_7 = arith.constant 0 : index
    %8 = vector.load %arg4[%c0_6, %c0_7] : memref<1x32xf32, #tpu.memory_space<vmem>>, vector<1x32xf32>
    %cst_8 = arith.constant dense<0.000000e+00> : vector<1x8xf32>
    %9 = tpu.matmul %8, %7, %cst_8 {dimension_numbers = #tpu.dot_dimension_numbers<[1], [1], [0], [0], [0, 0, 1, 0], [], []>} : vector<1x32xf32>, vector<8x32xf32>, vector<1x8xf32> -> vector<1x8xf32>
    %c0_9 = arith.constant 0 : index
    %10 = memref.load %arg5[%c0_9] : memref<1xf32, #tpu.memory_space<smem>>
    %11 = vector.broadcast %10 : f32 to vector<1x8xf32>
    %12 = arith.addf %9, %11 : vector<1x8xf32>
    %13 = arith.negf %12 : vector<1x8xf32>
    %14 = math.exp %13 : vector<1x8xf32>
    %cst_10 = arith.constant 1.000000e+00 : f32
    %15 = vector.broadcast %cst_10 : f32 to vector<1x8xf32>
    %16 = arith.addf %15, %14 : vector<1x8xf32>
    %17 = arith.divf %15, %16 : vector<1x8xf32>
    %18 = vector.shape_cast %17 : vector<1x8xf32> to vector<8x1xf32>
    %c0_11 = arith.constant 0 : index
    %c0_12 = arith.constant 0 : index
    %19 = vector.load %arg6[%c0_11, %c0_12] : memref<8x1xf32, #tpu.memory_space<vmem>>, vector<8x1xf32>
    tpu.vector_store %arg6[%c0_11, %c0_12], %18 {strides = array<i32>} : memref<8x1xf32, #tpu.memory_space<vmem>>, vector<8x1xf32>,
    return
  }
  func.func @transform_0(%arg0: i32) -> (i32, i32) {
    %c0_i32 = arith.constant 0 : i32
    %c0_i32_0 = arith.constant 0 : i32
    return %arg0, %c0_i32 : i32, i32
  }
  func.func @transform_1(%arg0: i32) -> (i32, i32) {
    %c0_i32 = arith.constant 0 : i32
    %c0_i32_0 = arith.constant 0 : i32
    %c0_i32_1 = arith.constant 0 : i32
    return %c0_i32, %c0_i32_0 : i32, i32
  }
  func.func @transform_2(%arg0: i32) -> (i32, i32) {
    %c0_i32 = arith.constant 0 : i32
    %c0_i32_0 = arith.constant 0 : i32
    %c0_i32_1 = arith.constant 0 : i32
    return %c0_i32, %c0_i32_0 : i32, i32
  }
  func.func @transform_3(%arg0: i32) -> (i32, i32) {
    %c0_i32 = arith.constant 0 : i32
    %c0_i32_0 = arith.constant 0 : i32
    %c0_i32_1 = arith.constant 0 : i32
    return %c0_i32, %c0_i32_0 : i32, i32
  }
  func.func @transform_4(%arg0: i32) -> i32 {
    %c0_i32 = arith.constant 0 : i32
    %c0_i32_0 = arith.constant 0 : i32
    return %c0_i32 : i32
  }
  func.func @transform_5(%arg0: i32) -> (i32, i32) {
    %c0_i32 = arith.constant 0 : i32
    %c0_i32_0 = arith.constant 0 : i32
    return %arg0, %c0_i32 : i32, i32
  }
}

</mosaic_0001>

<llo_original>
// kernel: tpu_custom_call.1
$region0: #{tpu_custom_call.1}
  #allocation0 [shape = 'u32[]', space=smem, size = 0x4, offset = 0x4, fixed_abs, tag = 'smem constant byte address 0x4 - core index']
  #allocation1 [shape = 'u32[144,128]{1,0:T(1,128)}', space=vmem, size = 0x12000, scoped, tag = 'internal scratch']
  #allocation2 [shape = 'f32[1]{0:T(128)S(6)}', space=smem, size = 0x200, scoped, tag = 'scoped memory for tpu_custom_call.1']
  %s0 = inlined_call_operand.vmem [shape: f32[8,64], index: 0, kind: input, shape index: {}]
  %s1 = inlined_call_operand.vmem [shape: f32[64,32], index: 1, kind: input, shape index: {}]
  %s2 = inlined_call_operand.vmem [shape: f32[1,32], index: 2, kind: input, shape index: {}]
  %s3 = inlined_call_operand.vmem [shape: f32[1,32], index: 3, kind: input, shape index: {}]
  %s4 = inlined_call_operand.<no memory space> [shape: f32[1], index: 4, kind: input, shape index: {}]
  %s5 = inlined_call_operand.vmem [shape: f32[8,1], index: 5, kind: output, shape index: {}]
  %s6 = sld [smem:[#allocation0]]
  $region30: #{tpu_custom_call.1} parent=0
    _
  %s8 = ssub.s32 1, %s6
  %s9 = scalar_select 0, %s8, %s6
  %10 = sst [smem:[#allocation2]] %s4
  // Predicated region
  $region2: #{tpu_custom_call.1} parent=0 // pred_check
    _
  $region3: #{tpu_custom_call.1} parent=0 // pred_check_branch
    %12 = sbr.rel (0) target = $region5
  $region4: #{tpu_custom_call.1} parent=0 // pred_region
    _
  $region5: #{tpu_custom_call.1} parent=0 // pred_fallthru
    _
  // Predicated region
  $region6: #{tpu_custom_call.1} parent=0 // pred_check
    _
  $region7: #{tpu_custom_call.1} parent=0 // pred_check_branch
    %14 = sbr.rel (0) target = $region9
  $region8: #{tpu_custom_call.1} parent=0 // pred_region
    _
  $region9: #{tpu_custom_call.1} parent=0 // pred_fallthru
    _
  // Predicated region
  $region10: #{tpu_custom_call.1} parent=0 // pred_check
    _
  $region11: #{tpu_custom_call.1} parent=0 // pred_check_branch
    %16 = sbr.rel (0) target = $region13
  $region12: #{tpu_custom_call.1} parent=0 // pred_region
    _
  $region13: #{tpu_custom_call.1} parent=0 // pred_fallthru
    _
  // Predicated region
  $region14: #{tpu_custom_call.1} parent=0 // pred_check
    _
  $region15: #{tpu_custom_call.1} parent=0 // pred_check_branch
    %18 = sbr.rel (0) target = $region17
  $region16: #{tpu_custom_call.1} parent=0 // pred_region
    _
  $region17: #{tpu_custom_call.1} parent=0 // pred_fallthru
    _
  // Predicated region
  $region18: #{tpu_custom_call.1} parent=0 // pred_check
    _
  $region19: #{tpu_custom_call.1} parent=0 // pred_check_branch
    %20 = sbr.rel (0) target = $region21
  $region20: #{tpu_custom_call.1} parent=0 // pred_region
    _
  $region21: #{tpu_custom_call.1} parent=0 // pred_fallthru
    _
  %v21 = vld [vmem:[%s0] sm:$0xff]
  %v22 = vld [vmem:[%s1] sm:$0xff]
  %v23 = vld [vmem:[%s1 + $0x8] sm:$0xff]
  %v24 = vld [vmem:[%s1 + $0x10] sm:$0xff]
  %v25 = vld [vmem:[%s1 + $0x18] sm:$0xff]
  %v26 = vld [vmem:[%s1 + $0x20] sm:$0xff]
  %v27 = vld [vmem:[%s1 + $0x28] sm:$0xff]
  %v28 = vld [vmem:[%s1 + $0x30] sm:$0xff]
  %v29 = vld [vmem:[%s1 + $0x38] sm:$0xff]
  %v30 = vld [vmem:[%s2] sm:$0x1]
  %v32 = vlaneseq
  %v33 = vshrl.u32 %v32, 7
  %v34 = vsub.s32 0, %v33
  %v35 = vrot.slane %v30, %v34
  %vm37 = vcmask 523264
  %v39 = vsel %vm37, %v21, 0
  %41 = vmatprep.subr.mxu0 0.0
  %42 = vmatpush1.msra.mxu0 %v22
  %43 = vmatprep.subr.mxu0 0.0
  %44 = vmatpush1.msra.mxu0 %v23
  %45 = vmatprep.subr.mxu0 0.0
  %46 = vmatpush1.msra.mxu0 %v24
  %47 = vmatprep.subr.mxu0 0.0
  %48 = vmatpush1.msra.mxu0 %v25
  %49 = vmatprep.subr.mxu0 0.0
  %50 = vmatpush1.msra.mxu0 %v26
  %51 = vmatprep.subr.mxu0 0.0
  %52 = vmatpush1.msra.mxu0 %v27
  %53 = vmatprep.subr.mxu0 0.0
  %54 = vmatpush1.msra.mxu0 %v28
  %55 = vmatprep.subr.mxu0 0.0
  %56 = vmatpush1.msra.mxu0 %v29
  %57 = vmatprep.subr.mxu0 0.0
  %58 = vmatpush1.msra.mxu0 0.0
  %59 = vmatprep.subr.mxu0 0.0
  %60 = vmatpush1.msra.mxu0 0.0
  %61 = vmatprep.subr.mxu0 0.0
  %62 = vmatpush1.msra.mxu0 0.0
  %63 = vmatprep.subr.mxu0 0.0
  %64 = vmatpush1.msra.mxu0 0.0
  %65 = vmatprep.subr.mxu0 0.0
  %66 = vmatpush1.msra.mxu0 0.0
  %67 = vmatprep.subr.mxu0 0.0
  %68 = vmatpush1.msra.mxu0 0.0
  %69 = vmatprep.subr.mxu0 0.0
  %70 = vmatpush1.msra.mxu0 0.0
  %71 = vmatprep.subr.mxu0 0.0
  %72 = vmatpush1.msra.mxu0 0.0
  %73 = vmatprep.subr.mxu0 0.0
  %74 = vmatpush1.msra.mxu0 0.0
  %75 = vmatprep.subr.mxu0 0.0
  %76 = vmatpush1.msra.mxu0 0.0
  %77 = vmatprep.subr.mxu0 0.0
  %78 = vmatpush1.msra.mxu0 0.0
  %79 = vmatprep.subr.mxu0 0.0
  %80 = vmatpush1.msra.mxu0 0.0
  %81 = vmatprep.subr.mxu0 0.0
  %82 = vmatpush1.msra.mxu0 0.0
  %83 = vmatprep.subr.mxu0 0.0
  %84 = vmatpush1.msra.mxu0 0.0
  %85 = vmatprep.subr.mxu0 0.0
  %86 = vmatpush1.msra.mxu0 0.0
  %87 = vmatprep.subr.mxu0 0.0
  %88 = vmatpush1.msra.mxu0 0.0
  %89 = vmatprep.subr.mxu0 0.0
  %90 = vmatpush1.msra.mxu0 0.0
  %91 = vmatprep.subr.mxu0 0.0
  %92 = vmatpush1.msra.mxu0 0.0
  %93 = vmatprep.subr.mxu0 0.0
  %94 = vmatpush1.msra.mxu0 0.0
  %95 = vmatprep.subr.mxu0 0.0
  %96 = vmatpush1.msra.mxu0 0.0
  %97 = vmatprep.subr.mxu0 0.0
  %98 = vmatpush1.msra.mxu0 0.0
  %99 = vmatprep.subr.mxu0 0.0
  %100 = vmatpush1.msra.mxu0 0.0
  %101 = vmatprep.subr.mxu0 0.0
  %102 = vmatpush1.msra.mxu0 0.0
  %103 = vmatprep.subr.mxu0 0.0
  %104 = vmatpush1.msra.mxu0 0.0
  %105 = vmatprep.mubr.f32.mxu0 0.0
  %106 = vmatmul.mubr.f32.gmra.mrb[0].mxu0 %v39
  %v107 = vpop.f32.mrb[0].mxu0
  %v108 = vadd.f32 %v35, %v107
  %v109 = vpop.f32.mrb[0].mxu0
  %110 = vdwg.mxu0
  %v111 = vmax.f32 %v108, 0.0
  %v112 = vld [vmem:[%s3] sm:$0x1]
  %s113 = sld [smem:[#allocation2]]
  %v114 = vstv %s113
  %vm115 = vcmask 261120
  %v117 = vsel %vm115, %v112, 0
  %v120 = vsel %vm115, %v111, 0
  %122 = vmatprep.subr.mxu0 0.0
  %123 = vmatpush1.xpose.msra.mxu0 %v120
  %124 = vmatprep.subr.mxu0 0.0
  %125 = vmatpush1.xpose.msra.mxu0 0.0
  %126 = vmatprep.subr.mxu0 0.0
  %127 = vmatpush1.xpose.msra.mxu0 0.0
  %128 = vmatprep.subr.mxu0 0.0
  %129 = vmatpush1.xpose.msra.mxu0 0.0
  %130 = vmatprep.subr.mxu0 0.0
  %131 = vmatpush1.xpose.msra.mxu0 0.0
  %132 = vmatprep.subr.mxu0 0.0
  %133 = vmatpush1.xpose.msra.mxu0 0.0
  %134 = vmatprep.subr.mxu0 0.0
  %135 = vmatpush1.xpose.msra.mxu0 0.0
  %136 = vmatprep.subr.mxu0 0.0
  %137 = vmatpush1.xpose.msra.mxu0 0.0
  %138 = vmatprep.subr.mxu0 0.0
  %139 = vmatpush1.xpose.msra.mxu0 0.0
  %140 = vmatprep.subr.mxu0 0.0
  %141 = vmatpush1.xpose.msra.mxu0 0.0
  %142 = vmatprep.subr.mxu0 0.0
  %143 = vmatpush1.xpose.msra.mxu0 0.0
  %144 = vmatprep.subr.mxu0 0.0
  %145 = vmatpush1.xpose.msra.mxu0 0.0
  %146 = vmatprep.subr.mxu0 0.0
  %147 = vmatpush1.xpose.msra.mxu0 0.0
  %148 = vmatprep.subr.mxu0 0.0
  %149 = vmatpush1.xpose.msra.mxu0 0.0
  %150 = vmatprep.subr.mxu0 0.0
  %151 = vmatpush1.xpose.msra.mxu0 0.0
  %152 = vmatprep.subr.mxu0 0.0
  %153 = vmatpush1.xpose.msra.mxu0 0.0
  %154 = vmatprep.subr.mxu0 0.0
  %155 = vmatpush1.xpose.msra.mxu0 0.0
  %156 = vmatprep.subr.mxu0 0.0
  %157 = vmatpush1.xpose.msra.mxu0 0.0
  %158 = vmatprep.subr.mxu0 0.0
  %159 = vmatpush1.xpose.msra.mxu0 0.0
  %160 = vmatprep.subr.mxu0 0.0
  %161 = vmatpush1.xpose.msra.mxu0 0.0
  %162 = vmatprep.subr.mxu0 0.0
  %163 = vmatpush1.xpose.msra.mxu0 0.0
  %164 = vmatprep.subr.mxu0 0.0
  %165 = vmatpush1.xpose.msra.mxu0 0.0
  %166 = vmatprep.subr.mxu0 0.0
  %167 = vmatpush1.xpose.msra.mxu0 0.0
  %168 = vmatprep.subr.mxu0 0.0
  %169 = vmatpush1.xpose.msra.mxu0 0.0
  %170 = vmatprep.subr.mxu0 0.0
  %171 = vmatpush1.xpose.msra.mxu0 0.0
  %172 = vmatprep.subr.mxu0 0.0
  %173 = vmatpush1.xpose.msra.mxu0 0.0
  %174 = vmatprep.subr.mxu0 0.0
  %175 = vmatpush1.xpose.msra.mxu0 0.0
  %176 = vmatprep.subr.mxu0 0.0
  %177 = vmatpush1.xpose.msra.mxu0 0.0
  %178 = vmatprep.subr.mxu0 0.0
  %179 = vmatpush1.xpose.msra.mxu0 0.0
  %180 = vmatprep.subr.mxu0 0.0
  %181 = vmatpush1.xpose.msra.mxu0 0.0
  %182 = vmatprep.subr.mxu0 0.0
  %183 = vmatpush1.xpose.msra.mxu0 0.0
  %184 = vmatprep.subr.mxu0 0.0
  %185 = vmatpush1.xpose.msra.mxu0 0.0
  %186 = vmatprep.mubr.f32.mxu0 0.0
  %187 = vmatmul.mubr.f32.gmra.mrb[0].mxu0 %v117
  %v188 = vpop.f32.mrb[0].mxu0
  %v189 = vadd.f32 %v114, %v188
  %v190 = vpop.f32.mrb[0].mxu0
  %191 = vdwg.mxu0
  %v192 = vxor.u32 %v189, 2147483648
  %v193 = vmul.f32 %v192, 1.442695
  %v194 = vpow.pop %v193
  %v195 = vadd.f32 %v194, 1.0
  %v196 = vrcp.pop %v195
  %v197 = vmul.f32 1.0, %v196
  %v198 = vlaneseq
  %v199 = vshrl.u32 %v198, 7
  %v200 = vsub.s32 0, %v199
  %v201 = vrot.slane %v197, %v200
  %203 = vbcast.lane.b32.xlu0 %v201, 256
  %v204 = vpop.permute.xlu0 %203
  %vm205 = vcmask 7168
  %206 = vst.msk [vmem:[%s5] sm:$0xff] %vm205, %v204
  // Predicated region
  $region22: #{tpu_custom_call.1} parent=0 // pred_check
    _
  $region23: #{tpu_custom_call.1} parent=0 // pred_check_branch
    %208 = sbr.rel (0) target = $region25
  $region24: #{tpu_custom_call.1} parent=0 // pred_region
    _
  $region25: #{tpu_custom_call.1} parent=0 // pred_fallthru
    _
  // Predicated region
  $region26: #{tpu_custom_call.1} parent=0 // pred_check
    _
  $region27: #{tpu_custom_call.1} parent=0 // pred_check_branch
    %210 = sbr.rel (0) target = $region29
  $region28: #{tpu_custom_call.1} parent=0 // pred_region
    _
  $region29: #{tpu_custom_call.1} parent=0 // pred_fallthru
    _

</llo_original>
